<compile_context>
chip_gen: v6e
topology: v6e:2x2x1
jax: 0.10.0
libtpu: 0.0.40
codegen_flags: <defaults>
</compile_context>

<pallas_src>
import jax
import jax.numpy as jnp
import numpy as np
from jax.experimental import pallas as pl
from jax.experimental.pallas import tpu as pltpu

NEGATIVE_SLOPE = 0.007

# Conv params (fixed by the module definition)
CIN, COUT1, K1, S1, P1 = 6, 8, 8, 8, 8          # Conv2d
CMID, COUT2, K2, S2, P2 = 8, 14, 7, 7, 7        # ConvTranspose2d

KIN = CIN * K1 * K1          # 384 = 3*128   (lane-aligned GEMM K)
COLS = COUT2 * K2 * K2       # 686           (true transposed-conv columns)
COLS_PAD = 768               # 6*128         (lane-dense padded GEMM N)

MAX_TM = 1024                # row tile (per review: 1024-2048; 1024 is safe on v7x)
VMEM_LIMIT = 32 * 1024 * 1024  # ~3x the real double-buffered footprint at TM=1024


def _round_up(x, m):
    return (x + m - 1) // m * m


def _fused_kernel(xp_ref, wc_ref, b_ref, o_ref):
    # xp_ref : (TM, 384)   interior im2col patch tile
    # wc_ref : (384, TN)   folded weight  W1 @ W2   (zero-padded 686->768 cols)
    # b_ref  : (1, TN)     folded bias    b1 @ W2 + b2
    # o_ref  : (TM, TN)    leaky(conv_t columns), still in column layout
    z = jnp.dot(xp_ref[...], wc_ref[...],
                preferred_element_type=jnp.float32) + b_ref[...]
    o_ref[...] = jnp.where(z > 0, z, z * NEGATIVE_SLOPE)


def _fused_pallas(xp, wc_pad, bias_pad, tm, tn):
    Mp, Kin = xp.shape
    grid = (Mp // tm, COLS_PAD // tn)
    return pl.pallas_call(
        _fused_kernel,
        out_shape=jax.ShapeDtypeStruct((Mp, COLS_PAD), jnp.float32),
        grid=grid,
        in_specs=[
            pl.BlockSpec((tm, Kin), lambda i, j: (i, 0)),
            pl.BlockSpec((Kin, tn), lambda i, j: (0, j)),   # resident weight
            pl.BlockSpec((1, tn), lambda i, j: (0, j)),     # resident bias
        ],
        out_specs=pl.BlockSpec((tm, tn), lambda i, j: (i, j)),
        compiler_params=pltpu.CompilerParams(
            dimension_semantics=("parallel", "parallel"),   # all blocks independent
            vmem_limit_bytes=VMEM_LIMIT,
        ),
    )(xp, wc_pad, bias_pad)


@jax.jit
def model_forward(x, weight, w1, b1, w2, b2):
    """x: (N, 6, H, W) NCHW float32.  Returns (o, weight) like the PyTorch module."""
    N, Cin, H, W = x.shape
    assert Cin == CIN

    # Interior patch grid.  Border patches of the padded input are pure zero
    # padding and their transposed-conv output is exactly the cropped region,
    # so they are skipped entirely: no jnp.pad(x), no final crop.
    OHi, OWi = H // K1, W // K1
    out_h, out_w = OHi * K2, OWi * K2
    if OHi == 0 or OWi == 0:            # degenerate input (e.g. 1x1): empty output
        return jnp.zeros((N, COUT2, out_h, out_w), x.dtype), weight

    # ---- im2col of the interior (non-overlapping 8x8 tiles of raw x) ----
    # TODO(synk): this transpose and the col2im below still run as XLA copies;
    # fully fusing them into the kernel (pl.ANY + in-VMEM rearrangement) would
    # remove two more HBM round trips of the activations.
    xt = x[:, :, :OHi * K1, :OWi * K1]
    patches = xt.reshape(N, CIN, OHi, K1, OWi, K1)
    patches = jnp.transpose(patches, (0, 2, 4, 1, 3, 5))    # N,OHi,OWi,C,K1,K1
    xp = patches.reshape(N * OHi * OWi, KIN)                 # (M, 384)
    M = N * OHi * OWi

    # ---- Fold both convs into a single GEMM (exact by linearity) ----
    w1m = w1.reshape(COUT1, KIN).T                           # (384, 8)
    w2m = w2.reshape(CMID, COLS)                             # (8, 686)
    wc = jnp.dot(w1m, w2m, precision=jax.lax.Precision.HIGHEST)      # (384, 686)
    wc_pad = jnp.pad(wc, ((0, 0), (0, COLS_PAD - COLS)))     # (384, 768)
    bias = (jnp.dot(b1, w2m, precision=jax.lax.Precision.HIGHEST)
            + jnp.repeat(b2, K2 * K2))                       # (686,)
    bias_pad = jnp.pad(bias, (0, COLS_PAD - COLS)).reshape(1, COLS_PAD)

    # ---- Row tiling: pad M so every block is full (no masked edge stores) ----
    TM = min(MAX_TM, _round_up(M, 8))
    Mp = _round_up(M, TM)
    n_row_blocks = Mp // TM
    # If there would be only one row block, split the output columns so the
    # parallel grid still has >=2 blocks (keeps both v7x TensorCores busy).
    TN = COLS_PAD // 2 if n_row_blocks < 2 else COLS_PAD
    xp_p = jnp.pad(xp, ((0, Mp - M), (0, 0)))

    o_cols = _fused_pallas(xp_p, wc_pad, bias_pad, TM, TN)   # (Mp, 768)

    # ---- ConvTranspose2d col2im (stride == kernel => pure reordering) ----
    # One chained slice/reshape/transpose so XLA lowers it to a single copy.
    o = (o_cols[:M, :COLS]
         .reshape(N, OHi, OWi, COUT2, K2, K2)
         .transpose(0, 3, 1, 4, 2, 5)
         .reshape(N, COUT2, out_h, out_w))
    return o, weight


def _reference(x, w1, b1, w2, b2):
    """Plain-JAX reference using lax convolutions (PyTorch semantics)."""
    y = jax.lax.conv_general_dilated(
        x, w1, window_strides=(S1, S1), padding=((P1, P1), (P1, P1)),
        dimension_numbers=("NCHW", "OIHW", "NCHW"))
    y = y + b1[None, :, None, None]
    # ConvTranspose2d(pad=p) == full transposed conv then crop p per side.
    w2_f = jnp.transpose(jnp.flip(w2, axis=(2, 3)), (1, 0, 2, 3))   # (14,8,7,7)
    z_full = jax.lax.conv_general_dilated(
        y, w2_f, window_strides=(1, 1), padding=((K2 - 1, K2 - 1),) * 2,
        lhs_dilation=(S2, S2), dimension_numbers=("NCHW", "OIHW", "NCHW"))
    z = z_full[:, :, P2:-P2, P2:-P2] + b2[None, :, None, None]
    return jnp.where(z > 0, z, z * NEGATIVE_SLOPE)


if __name__ == "__main__":
    key = jax.random.PRNGKey(0)
    k1, k2, k3, k4, k5, k6 = jax.random.split(key, 6)

    # Deterministic synthetic parameters (shapes from the module __init__).
    w1 = jax.random.normal(k1, (COUT1, CIN, K1, K1), jnp.float32) * 0.05
    b1 = jax.random.normal(k2, (COUT1,), jnp.float32) * 0.05
    w2 = jax.random.normal(k3, (CMID, COUT2, K2, K2), jnp.float32) * 0.05
    b2 = jax.random.normal(k4, (COUT2,), jnp.float32) * 0.05

    # Small input consistent with the module: N=2, C=6, 16x16 spatial
    # (the module's 1x1 example would make the transposed-conv output empty).
    x = jax.random.normal(k5, (2, CIN, 16, 16), jnp.float32)
    weight = jax.random.normal(k6, (7, 7), jnp.float32)

    o, w_out = model_forward(x, weight, w1, b1, w2, b2)
    jax.block_until_ready(o)
    jax.block_until_ready(w_out)

    ref = _reference(x, w1, b1, w2, b2)
    np.testing.assert_allclose(np.asarray(o), np.asarray(ref), atol=1e-4, rtol=1e-4)
    assert o.shape == ref.shape == (2, COUT2, 14, 14)
    assert w_out.shape == (7, 7)
    np.testing.assert_array_equal(np.asarray(w_out), np.asarray(weight))

    print("KERNEL_OK")
</pallas_src>

<mosaic_0001>
module attributes {stable_mosaic.version = 11 : i64} {
  func.func @_fused_kernel(%arg0: i32, %arg1: i32, %arg2: memref<8x384xf32, #tpu.memory_space<vmem>>, %arg3: memref<384x384xf32, #tpu.memory_space<vmem>>, %arg4: memref<1x384xf32, #tpu.memory_space<vmem>>, %arg5: memref<8x384xf32, #tpu.memory_space<vmem>>) attributes {dimension_semantics = [#tpu.dimension_semantics<parallel>, #tpu.dimension_semantics<parallel>], iteration_bounds = array<i64: 1, 2>, scalar_prefetch = 0 : i64, scratch_operands = 0 : i64, tpu.core_type = #tpu.core_type<tc>, window_params = [{transform_indices = @transform_0, window_bounds = array<i64: 8, 384>}, {transform_indices = @transform_1, window_bounds = array<i64: 384, 384>}, {transform_indices = @transform_2, window_bounds = array<i64: 1, 384>}, {transform_indices = @transform_3, window_bounds = array<i64: 8, 384>}]} {
    %c0 = arith.constant 0 : index
    %c0_0 = arith.constant 0 : index
    %0 = vector.load %arg2[%c0, %c0_0] : memref<8x384xf32, #tpu.memory_space<vmem>>, vector<8x384xf32>
    %c0_1 = arith.constant 0 : index
    %c0_2 = arith.constant 0 : index
    %1 = vector.load %arg3[%c0_1, %c0_2] : memref<384x384xf32, #tpu.memory_space<vmem>>, vector<384x384xf32>
    %cst = arith.constant dense<0.000000e+00> : vector<8x384xf32>
    %2 = tpu.matmul %0, %1, %cst {dimension_numbers = #tpu.dot_dimension_numbers<[1], [0], [0], [1], [0, 0, 1, 1], [], []>} : vector<8x384xf32>, vector<384x384xf32>, vector<8x384xf32> -> vector<8x384xf32>
    %c0_3 = arith.constant 0 : index
    %c0_4 = arith.constant 0 : index
    %3 = vector.load %arg4[%c0_3, %c0_4] : memref<1x384xf32, #tpu.memory_space<vmem>>, vector<1x384xf32>
    %4 = vector.broadcast %3 : vector<1x384xf32> to vector<8x384xf32>
    %5 = arith.addf %2, %4 : vector<8x384xf32>
    %cst_5 = arith.constant 0.000000e+00 : f32
    %6 = vector.broadcast %cst_5 : f32 to vector<8x384xf32>
    %7 = arith.cmpf ogt, %5, %6 : vector<8x384xf32>
    %cst_6 = arith.constant 7.000000e-03 : f32
    %8 = vector.broadcast %cst_6 : f32 to vector<8x384xf32>
    %9 = arith.mulf %5, %8 : vector<8x384xf32>
    %10 = arith.select %7, %5, %9 : vector<8x384xi1>, vector<8x384xf32>
    %c0_7 = arith.constant 0 : index
    %c0_8 = arith.constant 0 : index
    %11 = vector.load %arg5[%c0_7, %c0_8] : memref<8x384xf32, #tpu.memory_space<vmem>>, vector<8x384xf32>
    tpu.vector_store %arg5[%c0_7, %c0_8], %10 {strides = array<i32>} : memref<8x384xf32, #tpu.memory_space<vmem>>, vector<8x384xf32>,
    return
  }
  func.func @transform_0(%arg0: i32, %arg1: i32) -> (i32, i32) {
    %c0_i32 = arith.constant 0 : i32
    %c0_i32_0 = arith.constant 0 : i32
    return %arg0, %c0_i32 : i32, i32
  }
  func.func @transform_1(%arg0: i32, %arg1: i32) -> (i32, i32) {
    %c0_i32 = arith.constant 0 : i32
    %c0_i32_0 = arith.constant 0 : i32
    return %c0_i32, %arg1 : i32, i32
  }
  func.func @transform_2(%arg0: i32, %arg1: i32) -> (i32, i32) {
    %c0_i32 = arith.constant 0 : i32
    %c0_i32_0 = arith.constant 0 : i32
    return %c0_i32, %arg1 : i32, i32
  }
  func.func @transform_3(%arg0: i32, %arg1: i32) -> (i32, i32) {
    %c0_i32 = arith.constant 0 : i32
    return %arg0, %arg1 : i32, i32
  }
}

</mosaic_0001>

<llo_original>
// kernel: model_forward.1
$region0: #{model_forward.1}
  #allocation0 [shape = 'u32[]', space=smem, size = 0x4, offset = 0x4, fixed_abs, tag = 'smem constant byte address 0x4 - core index']
  #allocation1 [shape = 'u32[144,128]{1,0:T(1,128)}', space=vmem, size = 0x12000, scoped, tag = 'internal scratch']
  %s0 = inlined_call_operand.vmem [shape: f32[8,384], index: 0, kind: input, shape index: {}]
  %s1 = inlined_call_operand.vmem [shape: f32[384,768], index: 1, kind: input, shape index: {}]
  %s2 = inlined_call_operand.vmem [shape: f32[1,768], index: 2, kind: input, shape index: {}]
  %s3 = inlined_call_operand.vmem [shape: f32[8,768], index: 3, kind: output, shape index: {}]
  %s4 = sld [smem:[#allocation0]]
  $region68: #{model_forward.1} parent=0
    _
  %s6 = ssub.s32 1, %s4
  %s7 = scalar_select 0, %s6, %s4
  $region1: #{model_forward.1} parent=0
    #allocation2 [shape = 'u8[1179648]{0}', space=vmem, size = 0x120000, scoped, tag = 'input window, operand 1']
    loop: start=0, step=1, limit=4
    $region2: #{model_forward.1} parent=1 // loop_pre_header
      _
    $region3: #{model_forward.1} parent=1 // loop_header
      %s9 = sphi 0, %s13
      %p10 = scmp.ge.s32.totalorder %s9, 4
      %s16 = sphi 0, %s28
      %s17 = sphi 0, %s24
      %s18 = sphi 0, %s16
      %s19 = sphi 0, %s17
      %s20 = sphi 0, %s18
      %s21 = sphi 0, %s19
      %s31 = sphi 0, %s33
      %s34 = sphi 0, %s31
      %s35 = sphi 0, %s34
      %s51 = sphi 0, %s35
      %s57 = sphi 0, %s59
      %s60 = sphi 0, %s57
      %s61 = sphi 0, %s60
      %s77 = sphi 0, %s61
      %s83 = sphi 0, %s85
      %s86 = sphi 0, %s83
      %s87 = sphi 0, %s86
      %s103 = sphi 0, %s87
      %s111 = sphi 0, %s113
      %s114 = sphi 0, %s111
      %s115 = sphi 0, %s114
      %s131 = sphi 0, %s115
    $region4: #{model_forward.1} parent=1 // loop_header_branch
      %12 = sbr.rel (%p10) target = $region8
    $region5: #{model_forward.1} parent=1 // loop_body
      %s14 = ssub.s32 %s9, 1
      %s15 = ssub.s32 %s9, 2
      %s22 = sadd.s32 1, %s17
      %p23 = scmp.ge.s32.totalorder %s22, 2
      %s24 = scalar_select %p23, 0, %s22
      %s25 = sadd.s32 1, %s16
      %s26 = scalar_select %p23, %s25, %s16
      %p27 = scmp.ge.s32.totalorder %s26, 1
      %s28 = scalar_select %p27, 0, %s26
      %s29 = ssub.s32 %s16, %s28
      %p30 = scmp.eq.s32.totalorder %s29, 0
      %s32 = sadd.s32 %s31, 1
      %s33 = scalar_select %p30, %s31, %s32
      %p36 = pneg %p30
      %p37 = scmp.eq.s32.totalorder %s9, 1
      %p38 = por %p36, %p37
      %p39 = scmp.ne.s32.totalorder %s31, %s34
      %p40 = scmp.eq.s32.totalorder %s9, 0
      %p41 = por %p39, %p40
      %p42 = scmp.ne.s32.totalorder %s31, %s34
      %p43 = scmp.eq.s32.totalorder %s14, 1
      %p44 = por %p42, %p43
      %p45 = scmp.ne.s32.totalorder %s34, %s35
      %p46 = scmp.eq.s32.totalorder %s14, 0
      %p47 = por %p45, %p46
      %p48 = scmp.ne.s32.totalorder %s34, %s35
      %p49 = scmp.eq.s32.totalorder %s15, 1
      %p50 = por %p48, %p49
      %p52 = scmp.ne.s32.totalorder %s35, %s51
      %p53 = scmp.eq.s32.totalorder %s15, 0
      %p54 = por %p52, %p53
      %s55 = ssub.s32 %s17, %s24
      %p56 = scmp.eq.s32.totalorder %s55, 0
      %s58 = sadd.s32 %s57, 1
      %s59 = scalar_select %p56, %s57, %s58
      %p62 = pneg %p56
      %p63 = scmp.eq.s32.totalorder %s9, 1
      %p64 = por %p62, %p63
      %p65 = scmp.ne.s32.totalorder %s57, %s60
      %p66 = scmp.eq.s32.totalorder %s9, 0
      %p67 = por %p65, %p66
      %p68 = scmp.ne.s32.totalorder %s57, %s60
      %p69 = scmp.eq.s32.totalorder %s14, 1
      %p70 = por %p68, %p69
      %p71 = scmp.ne.s32.totalorder %s60, %s61
      %p72 = scmp.eq.s32.totalorder %s14, 0
      %p73 = por %p71, %p72
      %p74 = scmp.ne.s32.totalorder %s60, %s61
      %p75 = scmp.eq.s32.totalorder %s15, 1
      %p76 = por %p74, %p75
      %p78 = scmp.ne.s32.totalorder %s61, %s77
      %p79 = scmp.eq.s32.totalorder %s15, 0
      %p80 = por %p78, %p79
      %s81 = ssub.s32 %s17, %s24
      %p82 = scmp.eq.s32.totalorder %s81, 0
      %s84 = sadd.s32 %s83, 1
      %s85 = scalar_select %p82, %s83, %s84
      %p88 = pneg %p82
      %p89 = scmp.eq.s32.totalorder %s9, 1
      %p90 = por %p88, %p89
      %p91 = scmp.ne.s32.totalorder %s83, %s86
      %p92 = scmp.eq.s32.totalorder %s9, 0
      %p93 = por %p91, %p92
      %p94 = scmp.ne.s32.totalorder %s83, %s86
      %p95 = scmp.eq.s32.totalorder %s14, 1
      %p96 = por %p94, %p95
      %p97 = scmp.ne.s32.totalorder %s86, %s87
      %p98 = scmp.eq.s32.totalorder %s14, 0
      %p99 = por %p97, %p98
      %p100 = scmp.ne.s32.totalorder %s86, %s87
      %p101 = scmp.eq.s32.totalorder %s15, 1
      %p102 = por %p100, %p101
      %p104 = scmp.ne.s32.totalorder %s87, %s103
      %p105 = scmp.eq.s32.totalorder %s15, 0
      %p106 = por %p104, %p105
      %s107 = ssub.s32 %s16, %s28
      %s108 = ssub.s32 %s17, %s24
      %s109 = sor.u32 %s107, %s108
      %p110 = scmp.eq.s32.totalorder %s109, 0
      %s112 = sadd.s32 %s111, 1
      %s113 = scalar_select %p110, %s111, %s112
      %p116 = pneg %p110
      %p117 = scmp.eq.s32.totalorder %s9, 1
      %p118 = por %p116, %p117
      %p119 = scmp.ne.s32.totalorder %s111, %s114
      %p120 = scmp.eq.s32.totalorder %s9, 0
      %p121 = por %p119, %p120
      %p122 = scmp.ne.s32.totalorder %s111, %s114
      %p123 = scmp.eq.s32.totalorder %s14, 1
      %p124 = por %p122, %p123
      %p125 = scmp.ne.s32.totalorder %s114, %s115
      %p126 = scmp.eq.s32.totalorder %s14, 0
      %p127 = por %p125, %p126
      %p128 = scmp.ne.s32.totalorder %s114, %s115
      %p129 = scmp.eq.s32.totalorder %s15, 1
      %p130 = por %p128, %p129
      %p132 = scmp.ne.s32.totalorder %s115, %s131
      %p133 = scmp.eq.s32.totalorder %s15, 0
      %p134 = por %p132, %p133
      %p135 = scmp.le.s32.totalorder 1, %s9
      %p136 = scmp.lt.s32.totalorder %s9, 3
      %p137 = pnand %p135, %p136
      %p138 = pneg %p137
      // Predicated region
      $region9: #{model_forward.1} parent=5 // pred_check
        _
      $region10: #{model_forward.1} parent=5 // pred_check_branch
        %140 = sbr.rel (%p137) target = $region12
      $region11: #{model_forward.1} parent=5 // pred_region
        %s141 = ssub.s32 %s9, 1
        // Predicated region
        $region13: #{model_forward.1} parent=11 // pred_check
          %p142 = pneg %p47
        $region14: #{model_forward.1} parent=11 // pred_check_branch
          %144 = sbr.rel (%p142) target = $region16
        $region15: #{model_forward.1} parent=11 // pred_region
          %p145 = scmp.lt.s32.totalorder %s18, 0
          %s146 = scalar_select %p145, %s18, 0
          %s147 = smul.addr %s146, 3
          %s148 = smul.addr %s147, 8
          %s149 = scalar_lea.vmem %s0, %s148
        $region16: #{model_forward.1} parent=11 // pred_fallthru
          _
      $region12: #{model_forward.1} parent=5 // pred_fallthru
        _
      %p150 = scmp.lt.s32.totalorder %s9, 2
      // Predicated region
      $region17: #{model_forward.1} parent=5 // pred_check
        %p151 = pneg %p150
      $region18: #{model_forward.1} parent=5 // pred_check_branch
        %153 = sbr.rel (%p151) target = $region20
      $region19: #{model_forward.1} parent=5 // pred_region
        // Predicated region
        $region21: #{model_forward.1} parent=19 // pred_check
          %p154 = pneg %p67
        $region22: #{model_forward.1} parent=19 // pred_check_branch
          %156 = sbr.rel (%p154) target = $region24
        $region23: #{model_forward.1} parent=19 // pred_region
          %s157 = sand.u32 %s57, 1
          %s158 = sand.u32 %s57, 1
          %s159 = smul.addr %s158, 1152
          %s160 = scalar_lea.vmem [#allocation2], %s159
          %s161 = smul.u32 3, %s17
          %s162 = smul.addr %s161, 8
          %s163 = scalar_lea.vmem %s1, %s162
          // Predicated region
          $region25: #{model_forward.1} parent=23 // pred_check
            _
          $region26: #{model_forward.1} parent=23 // pred_check_branch
            %165 = sbr.rel (0) target = $region28
          $region27: #{model_forward.1} parent=23 // pred_region
            // Predicated region
            $region29: #{model_forward.1} parent=27 // pred_check
              _
            $region30: #{model_forward.1} parent=27 // pred_check_branch
              %167 = sbr.rel (0) target = $region32
            $region31: #{model_forward.1} parent=27 // pred_region
              loop: start=0, step=1, limit=1
              $region33: #{model_forward.1} parent=31 // loop_pre_header
                _
              $region34: #{model_forward.1} parent=31 // loop_header
                %s169 = sphi 0, %s173
                %p170 = scmp.ge.s32.totalorder %s169, 1
                %s174 = sphi %s163, %s163
                %s175 = sphi %s160, %s160
              $region35: #{model_forward.1} parent=31 // loop_header_branch
                %172 = sbr.rel (%p170) target = $region39
              $region36: #{model_forward.1} parent=31 // loop_body
                %v176 = vld [vmem:[%s174] sm:$0xff]
                %177 = vst [vmem:[%s175] sm:$0xff] %v176
                %v178 = vld [vmem:[%s174 + $0x8] sm:$0xff]
                %179 = vst [vmem:[%s175 + $0x8] sm:$0xff] %v178
                %v180 = vld [vmem:[%s174 + $0x10] sm:$0xff]
                %181 = vst [vmem:[%s175 + $0x10] sm:$0xff] %v180
                %v182 = vld [vmem:[%s174 + $0x30] sm:$0xff]
                %183 = vst [vmem:[%s175 + $0x18] sm:$0xff] %v182
                %v184 = vld [vmem:[%s174 + $0x38] sm:$0xff]
                %185 = vst [vmem:[%s175 + $0x20] sm:$0xff] %v184
                %v186 = vld [vmem:[%s174 + $0x40] sm:$0xff]
                %187 = vst [vmem:[%s175 + $0x28] sm:$0xff] %v186
                %v188 = vld [vmem:[%s174 + $0x60] sm:$0xff]
                %189 = vst [vmem:[%s175 + $0x30] sm:$0xff] %v188
                %v190 = vld [vmem:[%s174 + $0x68] sm:$0xff]
                %191 = vst [vmem:[%s175 + $0x38] sm:$0xff] %v190
                %v192 = vld [vmem:[%s174 + $0x70] sm:$0xff]
                %193 = vst [vmem:[%s175 + $0x40] sm:$0xff] %v192
                %v194 = vld [vmem:[%s174 + $0x90] sm:$0xff]
                %195 = vst [vmem:[%s175 + $0x48] sm:$0xff] %v194
                %v196 = vld [vmem:[%s174 + $0x98] sm:$0xff]
                %197 = vst [vmem:[%s175 + $0x50] sm:$0xff] %v196
                %v198 = vld [vmem:[%s174 + $0xa0] sm:$0xff]
                %199 = vst [vmem:[%s175 + $0x58] sm:$0xff] %v198
                %v200 = vld [vmem:[%s174 + $0xc0] sm:$0xff]
                %201 = vst [vmem:[%s175 + $0x60] sm:$0xff] %v200
                %v202 = vld [vmem:[%s174 + $0xc8] sm:$0xff]
                %203 = vst [vmem:[%s175 + $0x68] sm:$0xff] %v202
                %v204 = vld [vmem:[%s174 + $0xd0] sm:$0xff]
                %205 = vst [vmem:[%s175 + $0x70] sm:$0xff] %v204
                %v206 = vld [vmem:[%s174 + $0xf0] sm:$0xff]
                %207 = vst [vmem:[%s175 + $0x78] sm:$0xff] %v206
                %v208 = vld [vmem:[%s174 + $0xf8] sm:$0xff]
                %209 = vst [vmem:[%s175 + $0x80] sm:$0xff] %v208
                %v210 = vld [vmem:[%s174 + $0x100] sm:$0xff]
                %211 = vst [vmem:[%s175 + $0x88] sm:$0xff] %v210
                %v212 = vld [vmem:[%s174 + $0x120] sm:$0xff]
                %213 = vst [vmem:[%s175 + $0x90] sm:$0xff] %v212
                %v214 = vld [vmem:[%s174 + $0x128] sm:$0xff]
                %215 = vst [vmem:[%s175 + $0x98] sm:$0xff] %v214
                %v216 = vld [vmem:[%s174 + $0x130] sm:$0xff]
                %217 = vst [vmem:[%s175 + $0xa0] sm:$0xff] %v216
                %v218 = vld [vmem:[%s174 + $0x150] sm:$0xff]
                %219 = vst [vmem:[%s175 + $0xa8] sm:$0xff] %v218
                %v220 = vld [vmem:[%s174 + $0x158] sm:$0xff]
                %221 = vst [vmem:[%s175 + $0xb0] sm:$0xff] %v220
                %v222 = vld [vmem:[%s174 + $0x160] sm:$0xff]
                %223 = vst [vmem:[%s175 + $0xb8] sm:$0xff] %v222
                %v224 = vld [vmem:[%s174 + $0x180] sm:$0xff]
                %225 = vst [vmem:[%s175 + $0xc0] sm:$0xff] %v224
                %v226 = vld [vmem:[%s174 + $0x188] sm:$0xff]
                %227 = vst [vmem:[%s175 + $0xc8] sm:$0xff] %v226
                %v228 = vld [vmem:[%s174 + $0x190] sm:$0xff]
                %229 = vst [vmem:[%s175 + $0xd0] sm:$0xff] %v228
                %v230 = vld [vmem:[%s174 + $0x1b0] sm:$0xff]
                %231 = vst [vmem:[%s175 + $0xd8] sm:$0xff] %v230
                %v232 = vld [vmem:[%s174 + $0x1b8] sm:$0xff]
                %233 = vst [vmem:[%s175 + $0xe0] sm:$0xff] %v232
                %v234 = vld [vmem:[%s174 + $0x1c0] sm:$0xff]
                %235 = vst [vmem:[%s175 + $0xe8] sm:$0xff] %v234
                %v236 = vld [vmem:[%s174 + $0x1e0] sm:$0xff]
                %237 = vst [vmem:[%s175 + $0xf0] sm:$0xff] %v236
                %v238 = vld [vmem:[%s174 + $0x1e8] sm:$0xff]
                %239 = vst [vmem:[%s175 + $0xf8] sm:$0xff] %v238
                %v240 = vld [vmem:[%s174 + $0x1f0] sm:$0xff]
                %241 = vst [vmem:[%s175 + $0x100] sm:$0xff] %v240
                %v242 = vld [vmem:[%s174 + $0x210] sm:$0xff]
                %243 = vst [vmem:[%s175 + $0x108] sm:$0xff] %v242
                %v244 = vld [vmem:[%s174 + $0x218] sm:$0xff]
                %245 = vst [vmem:[%s175 + $0x110] sm:$0xff] %v244
                %v246 = vld [vmem:[%s174 + $0x220] sm:$0xff]
                %247 = vst [vmem:[%s175 + $0x118] sm:$0xff] %v246
                %v248 = vld [vmem:[%s174 + $0x240] sm:$0xff]
                %249 = vst [vmem:[%s175 + $0x120] sm:$0xff] %v248
                %v250 = vld [vmem:[%s174 + $0x248] sm:$0xff]
                %251 = vst [vmem:[%s175 + $0x128] sm:$0xff] %v250
                %v252 = vld [vmem:[%s174 + $0x250] sm:$0xff]
                %253 = vst [vmem:[%s175 + $0x130] sm:$0xff] %v252
                %v254 = vld [vmem:[%s174 + $0x270] sm:$0xff]
                %255 = vst [vmem:[%s175 + $0x138] sm:$0xff] %v254
                %v256 = vld [vmem:[%s174 + $0x278] sm:$0xff]
                %257 = vst [vmem:[%s175 + $0x140] sm:$0xff] %v256
                %v258 = vld [vmem:[%s174 + $0x280] sm:$0xff]
                %259 = vst [vmem:[%s175 + $0x148] sm:$0xff] %v258
                %v260 = vld [vmem:[%s174 + $0x2a0] sm:$0xff]
                %261 = vst [vmem:[%s175 + $0x150] sm:$0xff] %v260
                %v262 = vld [vmem:[%s174 + $0x2a8] sm:$0xff]
                %263 = vst [vmem:[%s175 + $0x158] sm:$0xff] %v262
                %v264 = vld [vmem:[%s174 + $0x2b0] sm:$0xff]
                %265 = vst [vmem:[%s175 + $0x160] sm:$0xff] %v264
                %v266 = vld [vmem:[%s174 + $0x2d0] sm:$0xff]
                %267 = vst [vmem:[%s175 + $0x168] sm:$0xff] %v266
                %v268 = vld [vmem:[%s174 + $0x2d8] sm:$0xff]
                %269 = vst [vmem:[%s175 + $0x170] sm:$0xff] %v268
                %v270 = vld [vmem:[%s174 + $0x2e0] sm:$0xff]
                %271 = vst [vmem:[%s175 + $0x178] sm:$0xff] %v270
                %v272 = vld [vmem:[%s174 + $0x300] sm:$0xff]
                %273 = vst [vmem:[%s175 + $0x180] sm:$0xff] %v272
                %v274 = vld [vmem:[%s174 + $0x308] sm:$0xff]
                %275 = vst [vmem:[%s175 + $0x188] sm:$0xff] %v274
                %v276 = vld [vmem:[%s174 + $0x310] sm:$0xff]
                %277 = vst [vmem:[%s175 + $0x190] sm:$0xff] %v276
                %v278 = vld [vmem:[%s174 + $0x330] sm:$0xff]
                %279 = vst [vmem:[%s175 + $0x198] sm:$0xff] %v278
                %v280 = vld [vmem:[%s174 + $0x338] sm:$0xff]
                %281 = vst [vmem:[%s175 + $0x1a0] sm:$0xff] %v280
                %v282 = vld [vmem:[%s174 + $0x340] sm:$0xff]
                %283 = vst [vmem:[%s175 + $0x1a8] sm:$0xff] %v282
                %v284 = vld [vmem:[%s174 + $0x360] sm:$0xff]
                %285 = vst [vmem:[%s175 + $0x1b0] sm:$0xff] %v284
                %v286 = vld [vmem:[%s174 + $0x368] sm:$0xff]
                %287 = vst [vmem:[%s175 + $0x1b8] sm:$0xff] %v286
                %v288 = vld [vmem:[%s174 + $0x370] sm:$0xff]
                %289 = vst [vmem:[%s175 + $0x1c0] sm:$0xff] %v288
                %v290 = vld [vmem:[%s174 + $0x390] sm:$0xff]
                %291 = vst [vmem:[%s175 + $0x1c8] sm:$0xff] %v290
                %v292 = vld [vmem:[%s174 + $0x398] sm:$0xff]
                %293 = vst [vmem:[%s175 + $0x1d0] sm:$0xff] %v292
                %v294 = vld [vmem:[%s174 + $0x3a0] sm:$0xff]
                %295 = vst [vmem:[%s175 + $0x1d8] sm:$0xff] %v294
                %v296 = vld [vmem:[%s174 + $0x3c0] sm:$0xff]
                %297 = vst [vmem:[%s175 + $0x1e0] sm:$0xff] %v296
                %v298 = vld [vmem:[%s174 + $0x3c8] sm:$0xff]
                %299 = vst [vmem:[%s175 + $0x1e8] sm:$0xff] %v298
                %v300 = vld [vmem:[%s174 + $0x3d0] sm:$0xff]
                %301 = vst [vmem:[%s175 + $0x1f0] sm:$0xff] %v300
                %v302 = vld [vmem:[%s174 + $0x3f0] sm:$0xff]
                %303 = vst [vmem:[%s175 + $0x1f8] sm:$0xff] %v302
                %v304 = vld [vmem:[%s174 + $0x3f8] sm:$0xff]
                %305 = vst [vmem:[%s175 + $0x200] sm:$0xff] %v304
                %v306 = vld [vmem:[%s174 + $0x400] sm:$0xff]
                %307 = vst [vmem:[%s175 + $0x208] sm:$0xff] %v306
                %v308 = vld [vmem:[%s174 + $0x420] sm:$0xff]
                %309 = vst [vmem:[%s175 + $0x210] sm:$0xff] %v308
                %v310 = vld [vmem:[%s174 + $0x428] sm:$0xff]
                %311 = vst [vmem:[%s175 + $0x218] sm:$0xff] %v310
                %v312 = vld [vmem:[%s174 + $0x430] sm:$0xff]
                %313 = vst [vmem:[%s175 + $0x220] sm:$0xff] %v312
                %v314 = vld [vmem:[%s174 + $0x450] sm:$0xff]
                %315 = vst [vmem:[%s175 + $0x228] sm:$0xff] %v314
                %v316 = vld [vmem:[%s174 + $0x458] sm:$0xff]
                %317 = vst [vmem:[%s175 + $0x230] sm:$0xff] %v316
                %v318 = vld [vmem:[%s174 + $0x460] sm:$0xff]
                %319 = vst [vmem:[%s175 + $0x238] sm:$0xff] %v318
                %v320 = vld [vmem:[%s174 + $0x480] sm:$0xff]
                %321 = vst [vmem:[%s175 + $0x240] sm:$0xff] %v320
                %v322 = vld [vmem:[%s174 + $0x488] sm:$0xff]
                %323 = vst [vmem:[%s175 + $0x248] sm:$0xff] %v322
                %v324 = vld [vmem:[%s174 + $0x490] sm:$0xff]
                %325 = vst [vmem:[%s175 + $0x250] sm:$0xff] %v324
                %v326 = vld [vmem:[%s174 + $0x4b0] sm:$0xff]
                %327 = vst [vmem:[%s175 + $0x258] sm:$0xff] %v326
                %v328 = vld [vmem:[%s174 + $0x4b8] sm:$0xff]
                %329 = vst [vmem:[%s175 + $0x260] sm:$0xff] %v328
                %v330 = vld [vmem:[%s174 + $0x4c0] sm:$0xff]
                %331 = vst [vmem:[%s175 + $0x268] sm:$0xff] %v330
                %v332 = vld [vmem:[%s174 + $0x4e0] sm:$0xff]
                %333 = vst [vmem:[%s175 + $0x270] sm:$0xff] %v332
                %v334 = vld [vmem:[%s174 + $0x4e8] sm:$0xff]
                %335 = vst [vmem:[%s175 + $0x278] sm:$0xff] %v334
                %v336 = vld [vmem:[%s174 + $0x4f0] sm:$0xff]
                %337 = vst [vmem:[%s175 + $0x280] sm:$0xff] %v336
                %v338 = vld [vmem:[%s174 + $0x510] sm:$0xff]
                %339 = vst [vmem:[%s175 + $0x288] sm:$0xff] %v338
                %v340 = vld [vmem:[%s174 + $0x518] sm:$0xff]
                %341 = vst [vmem:[%s175 + $0x290] sm:$0xff] %v340
                %v342 = vld [vmem:[%s174 + $0x520] sm:$0xff]
                %343 = vst [vmem:[%s175 + $0x298] sm:$0xff] %v342
                %v344 = vld [vmem:[%s174 + $0x540] sm:$0xff]
                %345 = vst [vmem:[%s175 + $0x2a0] sm:$0xff] %v344
                %v346 = vld [vmem:[%s174 + $0x548] sm:$0xff]
                %347 = vst [vmem:[%s175 + $0x2a8] sm:$0xff] %v346
                %v348 = vld [vmem:[%s174 + $0x550] sm:$0xff]
                %349 = vst [vmem:[%s175 + $0x2b0] sm:$0xff] %v348
                %v350 = vld [vmem:[%s174 + $0x570] sm:$0xff]
                %351 = vst [vmem:[%s175 + $0x2b8] sm:$0xff] %v350
                %v352 = vld [vmem:[%s174 + $0x578] sm:$0xff]
                %353 = vst [vmem:[%s175 + $0x2c0] sm:$0xff] %v352
                %v354 = vld [vmem:[%s174 + $0x580] sm:$0xff]
                %355 = vst [vmem:[%s175 + $0x2c8] sm:$0xff] %v354
                %v356 = vld [vmem:[%s174 + $0x5a0] sm:$0xff]
                %357 = vst [vmem:[%s175 + $0x2d0] sm:$0xff] %v356
                %v358 = vld [vmem:[%s174 + $0x5a8] sm:$0xff]
                %359 = vst [vmem:[%s175 + $0x2d8] sm:$0xff] %v358
                %v360 = vld [vmem:[%s174 + $0x5b0] sm:$0xff]
                %361 = vst [vmem:[%s175 + $0x2e0] sm:$0xff] %v360
                %v362 = vld [vmem:[%s174 + $0x5d0] sm:$0xff]
                %363 = vst [vmem:[%s175 + $0x2e8] sm:$0xff] %v362
                %v364 = vld [vmem:[%s174 + $0x5d8] sm:$0xff]
                %365 = vst [vmem:[%s175 + $0x2f0] sm:$0xff] %v364
                %v366 = vld [vmem:[%s174 + $0x5e0] sm:$0xff]
                %367 = vst [vmem:[%s175 + $0x2f8] sm:$0xff] %v366
                %v368 = vld [vmem:[%s174 + $0x600] sm:$0xff]
                %369 = vst [vmem:[%s175 + $0x300] sm:$0xff] %v368
                %v370 = vld [vmem:[%s174 + $0x608] sm:$0xff]
                %371 = vst [vmem:[%s175 + $0x308] sm:$0xff] %v370
                %v372 = vld [vmem:[%s174 + $0x610] sm:$0xff]
                %373 = vst [vmem:[%s175 + $0x310] sm:$0xff] %v372
                %v374 = vld [vmem:[%s174 + $0x630] sm:$0xff]
                %375 = vst [vmem:[%s175 + $0x318] sm:$0xff] %v374
                %v376 = vld [vmem:[%s174 + $0x638] sm:$0xff]
                %377 = vst [vmem:[%s175 + $0x320] sm:$0xff] %v376
                %v378 = vld [vmem:[%s174 + $0x640] sm:$0xff]
                %379 = vst [vmem:[%s175 + $0x328] sm:$0xff] %v378
                %v380 = vld [vmem:[%s174 + $0x660] sm:$0xff]
                %381 = vst [vmem:[%s175 + $0x330] sm:$0xff] %v380
                %v382 = vld [vmem:[%s174 + $0x668] sm:$0xff]
                %383 = vst [vmem:[%s175 + $0x338] sm:$0xff] %v382
                %v384 = vld [vmem:[%s174 + $0x670] sm:$0xff]
                %385 = vst [vmem:[%s175 + $0x340] sm:$0xff] %v384
                %v386 = vld [vmem:[%s174 + $0x690] sm:$0xff]
                %387 = vst [vmem:[%s175 + $0x348] sm:$0xff] %v386
                %v388 = vld [vmem:[%s174 + $0x698] sm:$0xff]
                %389 = vst [vmem:[%s175 + $0x350] sm:$0xff] %v388
                %v390 = vld [vmem:[%s174 + $0x6a0] sm:$0xff]
                %391 = vst [vmem:[%s175 + $0x358] sm:$0xff] %v390
                %v392 = vld [vmem:[%s174 + $0x6c0] sm:$0xff]
                %393 = vst [vmem:[%s175 + $0x360] sm:$0xff] %v392
                %v394 = vld [vmem:[%s174 + $0x6c8] sm:$0xff]
                %395 = vst [vmem:[%s175 + $0x368] sm:$0xff] %v394
                %v396 = vld [vmem:[%s174 + $0x6d0] sm:$0xff]
                %397 = vst [vmem:[%s175 + $0x370] sm:$0xff] %v396
                %v398 = vld [vmem:[%s174 + $0x6f0] sm:$0xff]
                %399 = vst [vmem:[%s175 + $0x378] sm:$0xff] %v398
                %v400 = vld [vmem:[%s174 + $0x6f8] sm:$0xff]
                %401 = vst [vmem:[%s175 + $0x380] sm:$0xff] %v400
                %v402 = vld [vmem:[%s174 + $0x700] sm:$0xff]
                %403 = vst [vmem:[%s175 + $0x388] sm:$0xff] %v402
                %v404 = vld [vmem:[%s174 + $0x720] sm:$0xff]
                %405 = vst [vmem:[%s175 + $0x390] sm:$0xff] %v404
                %v406 = vld [vmem:[%s174 + $0x728] sm:$0xff]
                %407 = vst [vmem:[%s175 + $0x398] sm:$0xff] %v406
                %v408 = vld [vmem:[%s174 + $0x730] sm:$0xff]
                %409 = vst [vmem:[%s175 + $0x3a0] sm:$0xff] %v408
                %v410 = vld [vmem:[%s174 + $0x750] sm:$0xff]
                %411 = vst [vmem:[%s175 + $0x3a8] sm:$0xff] %v410
                %v412 = vld [vmem:[%s174 + $0x758] sm:$0xff]
                %413 = vst [vmem:[%s175 + $0x3b0] sm:$0xff] %v412
                %v414 = vld [vmem:[%s174 + $0x760] sm:$0xff]
                %415 = vst [vmem:[%s175 + $0x3b8] sm:$0xff] %v414
                %v416 = vld [vmem:[%s174 + $0x780] sm:$0xff]
                %417 = vst [vmem:[%s175 + $0x3c0] sm:$0xff] %v416
                %v418 = vld [vmem:[%s174 + $0x788] sm:$0xff]
                %419 = vst [vmem:[%s175 + $0x3c8] sm:$0xff] %v418
                %v420 = vld [vmem:[%s174 + $0x790] sm:$0xff]
                %421 = vst [vmem:[%s175 + $0x3d0] sm:$0xff] %v420
                %v422 = vld [vmem:[%s174 + $0x7b0] sm:$0xff]
                %423 = vst [vmem:[%s175 + $0x3d8] sm:$0xff] %v422
                %v424 = vld [vmem:[%s174 + $0x7b8] sm:$0xff]
                %425 = vst [vmem:[%s175 + $0x3e0] sm:$0xff] %v424
                %v426 = vld [vmem:[%s174 + $0x7c0] sm:$0xff]
                %427 = vst [vmem:[%s175 + $0x3e8] sm:$0xff] %v426
                %v428 = vld [vmem:[%s174 + $0x7e0] sm:$0xff]
                %429 = vst [vmem:[%s175 + $0x3f0] sm:$0xff] %v428
                %v430 = vld [vmem:[%s174 + $0x7e8] sm:$0xff]
                %431 = vst [vmem:[%s175 + $0x3f8] sm:$0xff] %v430
                %v432 = vld [vmem:[%s174 + $0x7f0] sm:$0xff]
                %433 = vst [vmem:[%s175 + $0x400] sm:$0xff] %v432
                %v434 = vld [vmem:[%s174 + $0x810] sm:$0xff]
                %435 = vst [vmem:[%s175 + $0x408] sm:$0xff] %v434
                %v436 = vld [vmem:[%s174 + $0x818] sm:$0xff]
                %437 = vst [vmem:[%s175 + $0x410] sm:$0xff] %v436
                %v438 = vld [vmem:[%s174 + $0x820] sm:$0xff]
                %439 = vst [vmem:[%s175 + $0x418] sm:$0xff] %v438
                %v440 = vld [vmem:[%s174 + $0x840] sm:$0xff]
                %441 = vst [vmem:[%s175 + $0x420] sm:$0xff] %v440
                %v442 = vld [vmem:[%s174 + $0x848] sm:$0xff]
                %443 = vst [vmem:[%s175 + $0x428] sm:$0xff] %v442
                %v444 = vld [vmem:[%s174 + $0x850] sm:$0xff]
                %445 = vst [vmem:[%s175 + $0x430] sm:$0xff] %v444
                %v446 = vld [vmem:[%s174 + $0x870] sm:$0xff]
                %447 = vst [vmem:[%s175 + $0x438] sm:$0xff] %v446
                %v448 = vld [vmem:[%s174 + $0x878] sm:$0xff]
                %449 = vst [vmem:[%s175 + $0x440] sm:$0xff] %v448
                %v450 = vld [vmem:[%s174 + $0x880] sm:$0xff]
                %451 = vst [vmem:[%s175 + $0x448] sm:$0xff] %v450
                %v452 = vld [vmem:[%s174 + $0x8a0] sm:$0xff]
                %453 = vst [vmem:[%s175 + $0x450] sm:$0xff] %v452
                %v454 = vld [vmem:[%s174 + $0x8a8] sm:$0xff]
                %455 = vst [vmem:[%s175 + $0x458] sm:$0xff] %v454
                %v456 = vld [vmem:[%s174 + $0x8b0] sm:$0xff]
                %457 = vst [vmem:[%s175 + $0x460] sm:$0xff] %v456
                %v458 = vld [vmem:[%s174 + $0x8d0] sm:$0xff]
                %459 = vst [vmem:[%s175 + $0x468] sm:$0xff] %v458
                %v460 = vld [vmem:[%s174 + $0x8d8] sm:$0xff]
                %461 = vst [vmem:[%s175 + $0x470] sm:$0xff] %v460
                %v462 = vld [vmem:[%s174 + $0x8e0] sm:$0xff]
                %463 = vst [vmem:[%s175 + $0x478] sm:$0xff] %v462
              $region37: #{model_forward.1} parent=31 // loop_footer
                %s173 = sadd.s32 1, %s169
              $region38: #{model_forward.1} parent=31 // loop_footer_branch
                %168 = sbr.rel target = $region34
              $region39: #{model_forward.1} parent=31 // loop_exit
                _
            $region32: #{model_forward.1} parent=27 // pred_fallthru
              _
            // Predicated region
            $region40: #{model_forward.1} parent=27 // pred_check
              _
            $region41: #{model_forward.1} parent=27 // pred_check_branch
              %465 = sbr.rel target = $region43
            $region42: #{model_forward.1} parent=27 // pred_region
              _
            $region43: #{model_forward.1} parent=27 // pred_fallthru
              _
          $region28: #{model_forward.1} parent=23 // pred_fallthru
            _
          %466 = vnop
        $region24: #{model_forward.1} parent=19 // pred_fallthru
          _
        // Predicated region
        $region44: #{model_forward.1} parent=19 // pred_check
          %p467 = pneg %p93
        $region45: #{model_forward.1} parent=19 // pred_check_branch
          %469 = sbr.rel (%p467) target = $region47
        $region46: #{model_forward.1} parent=19 // pred_region
          %s470 = smul.u32 3, %s17
          %p471 = scmp.lt.s32.totalorder %s470, 5
          %s472 = scalar_select %p471, %s470, 5
          %s473 = scalar_lea.vmem %s2, %s472
          %s474 = smul.u32 3, %s17
        $region47: #{model_forward.1} parent=19 // pred_fallthru
          _
      $region20: #{model_forward.1} parent=5 // pred_fallthru
        _
      %p475 = scmp.le.s32.totalorder 1, %s9
      %p476 = scmp.lt.s32.totalorder %s9, 3
      %p477 = pnand %p475, %p476
      %p478 = pneg %p477
      // Predicated region
      $region48: #{model_forward.1} parent=5 // pred_check
        _
      $region49: #{model_forward.1} parent=5 // pred_check_branch
        %480 = sbr.rel (%p477) target = $region51
      $region50: #{model_forward.1} parent=5 // pred_region
        %s481 = ssub.s32 %s9, 1
        %s482 = sand.u32 %s60, 1
        %s483 = sand.u32 %s60, 1
        %s484 = smul.addr %s483, 1152
        %s485 = scalar_lea.vmem [#allocation2], %s484
        // Predicated region
        $region52: #{model_forward.1} parent=50 // pred_check
          %p486 = pneg %p73
        $region53: #{model_forward.1} parent=50 // pred_check_branch
          %488 = sbr.rel (%p486) target = $region55
        $region54: #{model_forward.1} parent=50 // pred_region
          _
        $region55: #{model_forward.1} parent=50 // pred_fallthru
          _
        %p489 = scmp.lt.s32.totalorder %s18, 0
        %s490 = scalar_select %p489, %s18, 0
        %s491 = smul.addr %s490, 3
        %s492 = smul.addr %s491, 8
        %s493 = scalar_lea.vmem %s0, %s492
        %p494 = pneg %p47
        %p495 = pneg %p44
        %s496 = sand.u32 %s60, 1
        %s497 = sand.u32 %s60, 1
        %s498 = smul.addr %s497, 1152
        %s499 = scalar_lea.vmem [#allocation2], %s498
        %p500 = pneg %p73
        %p501 = pneg %p70
        %s502 = smul.u32 3, %s19
        %p503 = scmp.lt.s32.totalorder %s502, 5
        %s504 = scalar_select %p503, %s502, 5
        %s505 = scalar_lea.vmem %s2, %s504
        %p506 = pneg %p99
        %p507 = pneg %p96
        %p508 = pneg %p127
        %p509 = pneg %p124
        %s510 = smul.u32 3, %s19
        %p511 = scmp.lt.s32.totalorder %s18, 0
        %s512 = scalar_select %p511, %s18, 0
        %p513 = scmp.lt.s32.totalorder %s510, 5
        %s514 = scalar_select %p513, %s510, 5
        %s515 = smul.addr %s512, 6
        %s516 = sadd.s32 %s514, %s515
        %s517 = smul.addr %s516, 8
        %s518 = scalar_lea.vmem %s3, %s517
        %p519 = scmp.lt.s32.totalorder %s18, 0
        %s520 = scalar_select %p519, %s18, 0
        %s521 = smul.addr %s520, 3
        %s522 = smul.addr %s521, 8
        %s523 = scalar_lea.vmem %s0, %s522
        %s524 = smul.u32 3, %s19
        %s525 = smul.u32 3, %s19
        %p526 = scmp.lt.s32.totalorder %s525, 5
        %s527 = scalar_select %p526, %s525, 5
        %s528 = scalar_lea.vmem %s2, %s527
        %s529 = smul.u32 3, %s19
        %s530 = smul.u32 3, %s19
        %p531 = scmp.lt.s32.totalorder %s18, 0
        %s532 = scalar_select %p531, %s18, 0
        %p533 = scmp.lt.s32.totalorder %s530, 5
        %s534 = scalar_select %p533, %s530, 5
        %s535 = smul.addr %s532, 6
        %s536 = sadd.s32 %s534, %s535
        %s537 = smul.addr %s536, 8
        %s538 = scalar_lea.vmem %s3, %s537
        %s539 = smul.u32 3, %s19
        %v540 = vld [vmem:[%s523] sm:$0xff]
        %v541 = vld [vmem:[%s523 + $0x8] sm:$0xff]
        %v542 = vld [vmem:[%s523 + $0x10] sm:$0xff]
        %v543 = vld [vmem:[%s485] sm:$0xff]
        %v544 = vld [vmem:[%s485 + $0x8] sm:$0xff]
        %v545 = vld [vmem:[%s485 + $0x10] sm:$0xff]
        %v546 = vld [vmem:[%s485 + $0x18] sm:$0xff]
        %v547 = vld [vmem:[%s485 + $0x20] sm:$0xff]
        %v548 = vld [vmem:[%s485 + $0x28] sm:$0xff]
        %v549 = vld [vmem:[%s485 + $0x30] sm:$0xff]
        %v550 = vld [vmem:[%s485 + $0x38] sm:$0xff]
        %v551 = vld [vmem:[%s485 + $0x40] sm:$0xff]
        %v552 = vld [vmem:[%s485 + $0x48] sm:$0xff]
        %v553 = vld [vmem:[%s485 + $0x50] sm:$0xff]
        %v554 = vld [vmem:[%s485 + $0x58] sm:$0xff]
        %v555 = vld [vmem:[%s485 + $0x60] sm:$0xff]
        %v556 = vld [vmem:[%s485 + $0x68] sm:$0xff]
        %v557 = vld [vmem:[%s485 + $0x70] sm:$0xff]
        %v558 = vld [vmem:[%s485 + $0x78] sm:$0xff]
        %v559 = vld [vmem:[%s485 + $0x80] sm:$0xff]
        %v560 = vld [vmem:[%s485 + $0x88] sm:$0xff]
        %v561 = vld [vmem:[%s485 + $0x90] sm:$0xff]
        %v562 = vld [vmem:[%s485 + $0x98] sm:$0xff]
        %v563 = vld [vmem:[%s485 + $0xa0] sm:$0xff]
        %v564 = vld [vmem:[%s485 + $0xa8] sm:$0xff]
        %v565 = vld [vmem:[%s485 + $0xb0] sm:$0xff]
        %v566 = vld [vmem:[%s485 + $0xb8] sm:$0xff]
        %v567 = vld [vmem:[%s485 + $0xc0] sm:$0xff]
        %v568 = vld [vmem:[%s485 + $0xc8] sm:$0xff]
        %v569 = vld [vmem:[%s485 + $0xd0] sm:$0xff]
        %v570 = vld [vmem:[%s485 + $0xd8] sm:$0xff]
        %v571 = vld [vmem:[%s485 + $0xe0] sm:$0xff]
        %v572 = vld [vmem:[%s485 + $0xe8] sm:$0xff]
        %v573 = vld [vmem:[%s485 + $0xf0] sm:$0xff]
        %v574 = vld [vmem:[%s485 + $0xf8] sm:$0xff]
        %v575 = vld [vmem:[%s485 + $0x100] sm:$0xff]
        %v576 = vld [vmem:[%s485 + $0x108] sm:$0xff]
        %v577 = vld [vmem:[%s485 + $0x110] sm:$0xff]
        %v578 = vld [vmem:[%s485 + $0x118] sm:$0xff]
        %v579 = vld [vmem:[%s485 + $0x120] sm:$0xff]
        %v580 = vld [vmem:[%s485 + $0x128] sm:$0xff]
        %v581 = vld [vmem:[%s485 + $0x130] sm:$0xff]
        %v582 = vld [vmem:[%s485 + $0x138] sm:$0xff]
        %v583 = vld [vmem:[%s485 + $0x140] sm:$0xff]
        %v584 = vld [vmem:[%s485 + $0x148] sm:$0xff]
        %v585 = vld [vmem:[%s485 + $0x150] sm:$0xff]
        %v586 = vld [vmem:[%s485 + $0x158] sm:$0xff]
        %v587 = vld [vmem:[%s485 + $0x160] sm:$0xff]
        %v588 = vld [vmem:[%s485 + $0x168] sm:$0xff]
        %v589 = vld [vmem:[%s485 + $0x170] sm:$0xff]
        %v590 = vld [vmem:[%s485 + $0x178] sm:$0xff]
        %v591 = vld [vmem:[%s485 + $0x180] sm:$0xff]
        %v592 = vld [vmem:[%s485 + $0x188] sm:$0xff]
        %v593 = vld [vmem:[%s485 + $0x190] sm:$0xff]
        %v594 = vld [vmem:[%s485 + $0x198] sm:$0xff]
        %v595 = vld [vmem:[%s485 + $0x1a0] sm:$0xff]
        %v596 = vld [vmem:[%s485 + $0x1a8] sm:$0xff]
        %v597 = vld [vmem:[%s485 + $0x1b0] sm:$0xff]
        %v598 = vld [vmem:[%s485 + $0x1b8] sm:$0xff]
        %v599 = vld [vmem:[%s485 + $0x1c0] sm:$0xff]
        %v600 = vld [vmem:[%s485 + $0x1c8] sm:$0xff]
        %v601 = vld [vmem:[%s485 + $0x1d0] sm:$0xff]
        %v602 = vld [vmem:[%s485 + $0x1d8] sm:$0xff]
        %v603 = vld [vmem:[%s485 + $0x1e0] sm:$0xff]
        %v604 = vld [vmem:[%s485 + $0x1e8] sm:$0xff]
        %v605 = vld [vmem:[%s485 + $0x1f0] sm:$0xff]
        %v606 = vld [vmem:[%s485 + $0x1f8] sm:$0xff]
        %v607 = vld [vmem:[%s485 + $0x200] sm:$0xff]
        %v608 = vld [vmem:[%s485 + $0x208] sm:$0xff]
        %v609 = vld [vmem:[%s485 + $0x210] sm:$0xff]
        %v610 = vld [vmem:[%s485 + $0x218] sm:$0xff]
        %v611 = vld [vmem:[%s485 + $0x220] sm:$0xff]
        %v612 = vld [vmem:[%s485 + $0x228] sm:$0xff]
        %v613 = vld [vmem:[%s485 + $0x230] sm:$0xff]
        %v614 = vld [vmem:[%s485 + $0x238] sm:$0xff]
        %v615 = vld [vmem:[%s485 + $0x240] sm:$0xff]
        %v616 = vld [vmem:[%s485 + $0x248] sm:$0xff]
        %v617 = vld [vmem:[%s485 + $0x250] sm:$0xff]
        %v618 = vld [vmem:[%s485 + $0x258] sm:$0xff]
        %v619 = vld [vmem:[%s485 + $0x260] sm:$0xff]
        %v620 = vld [vmem:[%s485 + $0x268] sm:$0xff]
        %v621 = vld [vmem:[%s485 + $0x270] sm:$0xff]
        %v622 = vld [vmem:[%s485 + $0x278] sm:$0xff]
        %v623 = vld [vmem:[%s485 + $0x280] sm:$0xff]
        %v624 = vld [vmem:[%s485 + $0x288] sm:$0xff]
        %v625 = vld [vmem:[%s485 + $0x290] sm:$0xff]
        %v626 = vld [vmem:[%s485 + $0x298] sm:$0xff]
        %v627 = vld [vmem:[%s485 + $0x2a0] sm:$0xff]
        %v628 = vld [vmem:[%s485 + $0x2a8] sm:$0xff]
        %v629 = vld [vmem:[%s485 + $0x2b0] sm:$0xff]
        %v630 = vld [vmem:[%s485 + $0x2b8] sm:$0xff]
        %v631 = vld [vmem:[%s485 + $0x2c0] sm:$0xff]
        %v632 = vld [vmem:[%s485 + $0x2c8] sm:$0xff]
        %v633 = vld [vmem:[%s485 + $0x2d0] sm:$0xff]
        %v634 = vld [vmem:[%s485 + $0x2d8] sm:$0xff]
        %v635 = vld [vmem:[%s485 + $0x2e0] sm:$0xff]
        %v636 = vld [vmem:[%s485 + $0x2e8] sm:$0xff]
        %v637 = vld [vmem:[%s485 + $0x2f0] sm:$0xff]
        %v638 = vld [vmem:[%s485 + $0x2f8] sm:$0xff]
        %v639 = vld [vmem:[%s485 + $0x300] sm:$0xff]
        %v640 = vld [vmem:[%s485 + $0x308] sm:$0xff]
        %v641 = vld [vmem:[%s485 + $0x310] sm:$0xff]
        %v642 = vld [vmem:[%s485 + $0x318] sm:$0xff]
        %v643 = vld [vmem:[%s485 + $0x320] sm:$0xff]
        %v644 = vld [vmem:[%s485 + $0x328] sm:$0xff]
        %v645 = vld [vmem:[%s485 + $0x330] sm:$0xff]
        %v646 = vld [vmem:[%s485 + $0x338] sm:$0xff]
        %v647 = vld [vmem:[%s485 + $0x340] sm:$0xff]
        %v648 = vld [vmem:[%s485 + $0x348] sm:$0xff]
        %v649 = vld [vmem:[%s485 + $0x350] sm:$0xff]
        %v650 = vld [vmem:[%s485 + $0x358] sm:$0xff]
        %v651 = vld [vmem:[%s485 + $0x360] sm:$0xff]
        %v652 = vld [vmem:[%s485 + $0x368] sm:$0xff]
        %v653 = vld [vmem:[%s485 + $0x370] sm:$0xff]
        %v654 = vld [vmem:[%s485 + $0x378] sm:$0xff]
        %v655 = vld [vmem:[%s485 + $0x380] sm:$0xff]
        %v656 = vld [vmem:[%s485 + $0x388] sm:$0xff]
        %v657 = vld [vmem:[%s485 + $0x390] sm:$0xff]
        %v658 = vld [vmem:[%s485 + $0x398] sm:$0xff]
        %v659 = vld [vmem:[%s485 + $0x3a0] sm:$0xff]
        %v660 = vld [vmem:[%s485 + $0x3a8] sm:$0xff]
        %v661 = vld [vmem:[%s485 + $0x3b0] sm:$0xff]
        %v662 = vld [vmem:[%s485 + $0x3b8] sm:$0xff]
        %v663 = vld [vmem:[%s485 + $0x3c0] sm:$0xff]
        %v664 = vld [vmem:[%s485 + $0x3c8] sm:$0xff]
        %v665 = vld [vmem:[%s485 + $0x3d0] sm:$0xff]
        %v666 = vld [vmem:[%s485 + $0x3d8] sm:$0xff]
        %v667 = vld [vmem:[%s485 + $0x3e0] sm:$0xff]
        %v668 = vld [vmem:[%s485 + $0x3e8] sm:$0xff]
        %v669 = vld [vmem:[%s485 + $0x3f0] sm:$0xff]
        %v670 = vld [vmem:[%s485 + $0x3f8] sm:$0xff]
        %v671 = vld [vmem:[%s485 + $0x400] sm:$0xff]
        %v672 = vld [vmem:[%s485 + $0x408] sm:$0xff]
        %v673 = vld [vmem:[%s485 + $0x410] sm:$0xff]
        %v674 = vld [vmem:[%s485 + $0x418] sm:$0xff]
        %v675 = vld [vmem:[%s485 + $0x420] sm:$0xff]
        %v676 = vld [vmem:[%s485 + $0x428] sm:$0xff]
        %v677 = vld [vmem:[%s485 + $0x430] sm:$0xff]
        %v678 = vld [vmem:[%s485 + $0x438] sm:$0xff]
        %v679 = vld [vmem:[%s485 + $0x440] sm:$0xff]
        %v680 = vld [vmem:[%s485 + $0x448] sm:$0xff]
        %v681 = vld [vmem:[%s485 + $0x450] sm:$0xff]
        %v682 = vld [vmem:[%s485 + $0x458] sm:$0xff]
        %v683 = vld [vmem:[%s485 + $0x460] sm:$0xff]
        %v684 = vld [vmem:[%s485 + $0x468] sm:$0xff]
        %v685 = vld [vmem:[%s485 + $0x470] sm:$0xff]
        %v686 = vld [vmem:[%s485 + $0x478] sm:$0xff]
        %v687 = vld [vmem:[%s528] sm:$0x7]
        %v689 = vlaneseq
        %v690 = vshrl.u32 %v689, 7
        %v691 = vsub.s32 0, %v690
        %v692 = vrot.slane %v687, %v691
        %v693 = vlaneseq
        %v694 = vshrl.u32 %v693, 7
        %v695 = vsub.s32 1, %v694
        %v696 = vrot.slane %v687, %v695
        %v697 = vlaneseq
        %v698 = vshrl.u32 %v697, 7
        %v699 = vsub.s32 2, %v698
        %v700 = vrot.slane %v687, %v699
        %704 = vmatprep.subr.mxu0 %v589
        %705 = vmatpush1.msra.mxu0 %v588
        %706 = vmatprep.subr.mxu0 %v586
        %707 = vmatpush1.msra.mxu0 %v585
        %708 = vmatprep.subr.mxu0 %v583
        %709 = vmatpush1.msra.mxu0 %v582
        %710 = vmatprep.subr.mxu0 %v580
        %711 = vmatpush1.msra.mxu0 %v579
        %712 = vmatprep.subr.mxu0 %v577
        %713 = vmatpush1.msra.mxu0 %v576
        %714 = vmatprep.subr.mxu0 %v574
        %715 = vmatpush1.msra.mxu0 %v573
        %716 = vmatprep.subr.mxu0 %v571
        %717 = vmatpush1.msra.mxu0 %v570
        %718 = vmatprep.subr.mxu0 %v568
        %719 = vmatpush1.msra.mxu0 %v567
        %720 = vmatprep.subr.mxu0 %v565
        %721 = vmatpush1.msra.mxu0 %v564
        %722 = vmatprep.subr.mxu0 %v562
        %723 = vmatpush1.msra.mxu0 %v561
        %724 = vmatprep.subr.mxu0 %v559
        %725 = vmatpush1.msra.mxu0 %v558
        %726 = vmatprep.subr.mxu0 %v556
        %727 = vmatpush1.msra.mxu0 %v555
        %728 = vmatprep.subr.mxu0 %v553
        %729 = vmatpush1.msra.mxu0 %v552
        %730 = vmatprep.subr.mxu0 %v550
        %731 = vmatpush1.msra.mxu0 %v549
        %732 = vmatprep.subr.mxu0 %v547
        %733 = vmatpush1.msra.mxu0 %v546
        %734 = vmatprep.subr.mxu0 %v544
        %735 = vmatpush1.msra.mxu0 %v543
        %736 = vmatprep.subr.mxu0 %v637
        %737 = vmatpush2.msra.mxu0 %v636
        %738 = vmatprep.subr.mxu0 %v634
        %739 = vmatpush2.msra.mxu0 %v633
        %740 = vmatprep.subr.mxu0 %v631
        %741 = vmatpush2.msra.mxu0 %v630
        %742 = vmatprep.subr.mxu0 %v628
        %743 = vmatpush2.msra.mxu0 %v627
        %744 = vmatprep.subr.mxu0 %v625
        %745 = vmatpush2.msra.mxu0 %v624
        %746 = vmatprep.subr.mxu0 %v622
        %747 = vmatpush2.msra.mxu0 %v621
        %748 = vmatprep.subr.mxu0 %v619
        %749 = vmatpush2.msra.mxu0 %v618
        %750 = vmatprep.subr.mxu0 %v616
        %751 = vmatpush2.msra.mxu0 %v615
        %752 = vmatprep.subr.mxu0 %v613
        %753 = vmatpush2.msra.mxu0 %v612
        %754 = vmatprep.subr.mxu0 %v610
        %755 = vmatpush2.msra.mxu0 %v609
        %756 = vmatprep.subr.mxu0 %v607
        %757 = vmatpush2.msra.mxu0 %v606
        %758 = vmatprep.subr.mxu0 %v604
        %759 = vmatpush2.msra.mxu0 %v603
        %760 = vmatprep.subr.mxu0 %v601
        %761 = vmatpush2.msra.mxu0 %v600
        %762 = vmatprep.subr.mxu0 %v598
        %763 = vmatpush2.msra.mxu0 %v597
        %764 = vmatprep.subr.mxu0 %v595
        %765 = vmatpush2.msra.mxu0 %v594
        %766 = vmatprep.subr.mxu0 %v592
        %767 = vmatpush2.msra.mxu0 %v591
        %768 = vmatprep.mubr.f32.mxu0 %v541
        %769 = vmatmul.mubr.f32.gmra.mxu0 %v540
        %v770 = vpop.f32.mrf.mxu0
        %v771 = vadd.f32 %v692, %v770
        %v772 = vpop.f32.mrf.mxu0
        %v773 = vadd.f32 %v696, %v772
        %774 = vdwg.mxu0
        %775 = vmatprep.subr.mxu0 %v685
        %776 = vmatpush1.msra.mxu0 %v684
        %777 = vmatprep.subr.mxu0 %v682
        %778 = vmatpush1.msra.mxu0 %v681
        %779 = vmatprep.subr.mxu0 %v679
        %780 = vmatpush1.msra.mxu0 %v678
        %781 = vmatprep.subr.mxu0 %v676
        %782 = vmatpush1.msra.mxu0 %v675
        %783 = vmatprep.subr.mxu0 %v673
        %784 = vmatpush1.msra.mxu0 %v672
        %785 = vmatprep.subr.mxu0 %v670
        %786 = vmatpush1.msra.mxu0 %v669
        %787 = vmatprep.subr.mxu0 %v667
        %788 = vmatpush1.msra.mxu0 %v666
        %789 = vmatprep.subr.mxu0 %v664
        %790 = vmatpush1.msra.mxu0 %v663
        %791 = vmatprep.subr.mxu0 %v661
        %792 = vmatpush1.msra.mxu0 %v660
        %793 = vmatprep.subr.mxu0 %v658
        %794 = vmatpush1.msra.mxu0 %v657
        %795 = vmatprep.subr.mxu0 %v655
        %796 = vmatpush1.msra.mxu0 %v654
        %797 = vmatprep.subr.mxu0 %v652
        %798 = vmatpush1.msra.mxu0 %v651
        %799 = vmatprep.subr.mxu0 %v649
        %800 = vmatpush1.msra.mxu0 %v648
        %801 = vmatprep.subr.mxu0 %v646
        %802 = vmatpush1.msra.mxu0 %v645
        %803 = vmatprep.subr.mxu0 %v643
        %804 = vmatpush1.msra.mxu0 %v642
        %805 = vmatprep.subr.mxu0 %v640
        %806 = vmatpush1.msra.mxu0 %v639
        %807 = vmatprep.subr.mxu0 0.0
        %808 = vmatpush2.msra.mxu0 0.0
        %809 = vmatprep.subr.mxu0 0.0
        %810 = vmatpush2.msra.mxu0 0.0
        %811 = vmatprep.subr.mxu0 0.0
        %812 = vmatpush2.msra.mxu0 0.0
        %813 = vmatprep.subr.mxu0 0.0
        %814 = vmatpush2.msra.mxu0 0.0
        %815 = vmatprep.subr.mxu0 0.0
        %816 = vmatpush2.msra.mxu0 0.0
        %817 = vmatprep.subr.mxu0 0.0
        %818 = vmatpush2.msra.mxu0 0.0
        %819 = vmatprep.subr.mxu0 0.0
        %820 = vmatpush2.msra.mxu0 0.0
        %821 = vmatprep.subr.mxu0 0.0
        %822 = vmatpush2.msra.mxu0 0.0
        %823 = vmatprep.subr.mxu0 0.0
        %824 = vmatpush2.msra.mxu0 0.0
        %825 = vmatprep.subr.mxu0 0.0
        %826 = vmatpush2.msra.mxu0 0.0
        %827 = vmatprep.subr.mxu0 0.0
        %828 = vmatpush2.msra.mxu0 0.0
        %829 = vmatprep.subr.mxu0 0.0
        %830 = vmatpush2.msra.mxu0 0.0
        %831 = vmatprep.subr.mxu0 0.0
        %832 = vmatpush2.msra.mxu0 0.0
        %833 = vmatprep.subr.mxu0 0.0
        %834 = vmatpush2.msra.mxu0 0.0
        %835 = vmatprep.subr.mxu0 0.0
        %836 = vmatpush2.msra.mxu0 0.0
        %837 = vmatprep.subr.mxu0 0.0
        %838 = vmatpush2.msra.mxu0 0.0
        %839 = vmatprep.mubr.f32.mxu0 0.0
        %840 = vmatmul.mubr.f32.gmra.mxu0 %v542
        %v841 = vpop.f32.mrf.mxu0
        %v842 = vadd.f32 %v771, %v841
        %v843 = vpop.f32.mrf.mxu0
        %v844 = vadd.f32 %v773, %v843
        %845 = vdwg.mxu0
        %846 = vmatprep.subr.mxu0 0.0
        %847 = vmatpush1.msra.mxu0 %v590
        %848 = vmatprep.subr.mxu0 0.0
        %849 = vmatpush1.msra.mxu0 %v587
        %850 = vmatprep.subr.mxu0 0.0
        %851 = vmatpush1.msra.mxu0 %v584
        %852 = vmatprep.subr.mxu0 0.0
        %853 = vmatpush1.msra.mxu0 %v581
        %854 = vmatprep.subr.mxu0 0.0
        %855 = vmatpush1.msra.mxu0 %v578
        %856 = vmatprep.subr.mxu0 0.0
        %857 = vmatpush1.msra.mxu0 %v575
        %858 = vmatprep.subr.mxu0 0.0
        %859 = vmatpush1.msra.mxu0 %v572
        %860 = vmatprep.subr.mxu0 0.0
        %861 = vmatpush1.msra.mxu0 %v569
        %862 = vmatprep.subr.mxu0 0.0
        %863 = vmatpush1.msra.mxu0 %v566
        %864 = vmatprep.subr.mxu0 0.0
        %865 = vmatpush1.msra.mxu0 %v563
        %866 = vmatprep.subr.mxu0 0.0
        %867 = vmatpush1.msra.mxu0 %v560
        %868 = vmatprep.subr.mxu0 0.0
        %869 = vmatpush1.msra.mxu0 %v557
        %870 = vmatprep.subr.mxu0 0.0
        %871 = vmatpush1.msra.mxu0 %v554
        %872 = vmatprep.subr.mxu0 0.0
        %873 = vmatpush1.msra.mxu0 %v551
        %874 = vmatprep.subr.mxu0 0.0
        %875 = vmatpush1.msra.mxu0 %v548
        %876 = vmatprep.subr.mxu0 0.0
        %877 = vmatpush1.msra.mxu0 %v545
        %878 = vmatprep.subr.mxu0 0.0
        %879 = vmatpush2.msra.mxu0 %v638
        %880 = vmatprep.subr.mxu0 0.0
        %881 = vmatpush2.msra.mxu0 %v635
        %882 = vmatprep.subr.mxu0 0.0
        %883 = vmatpush2.msra.mxu0 %v632
        %884 = vmatprep.subr.mxu0 0.0
        %885 = vmatpush2.msra.mxu0 %v629
        %886 = vmatprep.subr.mxu0 0.0
        %887 = vmatpush2.msra.mxu0 %v626
        %888 = vmatprep.subr.mxu0 0.0
        %889 = vmatpush2.msra.mxu0 %v623
        %890 = vmatprep.subr.mxu0 0.0
        %891 = vmatpush2.msra.mxu0 %v620
        %892 = vmatprep.subr.mxu0 0.0
        %893 = vmatpush2.msra.mxu0 %v617
        %894 = vmatprep.subr.mxu0 0.0
        %895 = vmatpush2.msra.mxu0 %v614
        %896 = vmatprep.subr.mxu0 0.0
        %897 = vmatpush2.msra.mxu0 %v611
        %898 = vmatprep.subr.mxu0 0.0
        %899 = vmatpush2.msra.mxu0 %v608
        %900 = vmatprep.subr.mxu0 0.0
        %901 = vmatpush2.msra.mxu0 %v605
        %902 = vmatprep.subr.mxu0 0.0
        %903 = vmatpush2.msra.mxu0 %v602
        %904 = vmatprep.subr.mxu0 0.0
        %905 = vmatpush2.msra.mxu0 %v599
        %906 = vmatprep.subr.mxu0 0.0
        %907 = vmatpush2.msra.mxu0 %v596
        %908 = vmatprep.subr.mxu0 0.0
        %909 = vmatpush2.msra.mxu0 %v593
        %910 = vmatprep.mubr.f32.mxu0 %v541
        %911 = vmatmul.mubr.f32.gmra.mxu0 %v540
        %v912 = vpop.f32.mrf.mxu0
        %v913 = vadd.f32 %v700, %v912
        %v914 = vpop.f32.mrf.mxu0
        %915 = vdwg.mxu0
        %916 = vmatprep.subr.mxu0 0.0
        %917 = vmatpush1.msra.mxu0 %v686
        %918 = vmatprep.subr.mxu0 0.0
        %919 = vmatpush1.msra.mxu0 %v683
        %920 = vmatprep.subr.mxu0 0.0
        %921 = vmatpush1.msra.mxu0 %v680
        %922 = vmatprep.subr.mxu0 0.0
        %923 = vmatpush1.msra.mxu0 %v677
        %924 = vmatprep.subr.mxu0 0.0
        %925 = vmatpush1.msra.mxu0 %v674
        %926 = vmatprep.subr.mxu0 0.0
        %927 = vmatpush1.msra.mxu0 %v671
        %928 = vmatprep.subr.mxu0 0.0
        %929 = vmatpush1.msra.mxu0 %v668
        %930 = vmatprep.subr.mxu0 0.0
        %931 = vmatpush1.msra.mxu0 %v665
        %932 = vmatprep.subr.mxu0 0.0
        %933 = vmatpush1.msra.mxu0 %v662
        %934 = vmatprep.subr.mxu0 0.0
        %935 = vmatpush1.msra.mxu0 %v659
        %936 = vmatprep.subr.mxu0 0.0
        %937 = vmatpush1.msra.mxu0 %v656
        %938 = vmatprep.subr.mxu0 0.0
        %939 = vmatpush1.msra.mxu0 %v653
        %940 = vmatprep.subr.mxu0 0.0
        %941 = vmatpush1.msra.mxu0 %v650
        %942 = vmatprep.subr.mxu0 0.0
        %943 = vmatpush1.msra.mxu0 %v647
        %944 = vmatprep.subr.mxu0 0.0
        %945 = vmatpush1.msra.mxu0 %v644
        %946 = vmatprep.subr.mxu0 0.0
        %947 = vmatpush1.msra.mxu0 %v641
        %948 = vmatprep.subr.mxu0 0.0
        %949 = vmatpush2.msra.mxu0 0.0
        %950 = vmatprep.subr.mxu0 0.0
        %951 = vmatpush2.msra.mxu0 0.0
        %952 = vmatprep.subr.mxu0 0.0
        %953 = vmatpush2.msra.mxu0 0.0
        %954 = vmatprep.subr.mxu0 0.0
        %955 = vmatpush2.msra.mxu0 0.0
        %956 = vmatprep.subr.mxu0 0.0
        %957 = vmatpush2.msra.mxu0 0.0
        %958 = vmatprep.subr.mxu0 0.0
        %959 = vmatpush2.msra.mxu0 0.0
        %960 = vmatprep.subr.mxu0 0.0
        %961 = vmatpush2.msra.mxu0 0.0
        %962 = vmatprep.subr.mxu0 0.0
        %963 = vmatpush2.msra.mxu0 0.0
        %964 = vmatprep.subr.mxu0 0.0
        %965 = vmatpush2.msra.mxu0 0.0
        %966 = vmatprep.subr.mxu0 0.0
        %967 = vmatpush2.msra.mxu0 0.0
        %968 = vmatprep.subr.mxu0 0.0
        %969 = vmatpush2.msra.mxu0 0.0
        %970 = vmatprep.subr.mxu0 0.0
        %971 = vmatpush2.msra.mxu0 0.0
        %972 = vmatprep.subr.mxu0 0.0
        %973 = vmatpush2.msra.mxu0 0.0
        %974 = vmatprep.subr.mxu0 0.0
        %975 = vmatpush2.msra.mxu0 0.0
        %976 = vmatprep.subr.mxu0 0.0
        %977 = vmatpush2.msra.mxu0 0.0
        %978 = vmatprep.subr.mxu0 0.0
        %979 = vmatpush2.msra.mxu0 0.0
        %980 = vmatprep.mubr.f32.mxu0 0.0
        %981 = vmatmul.mubr.f32.gmra.mxu0 %v542
        %v982 = vpop.f32.mrf.mxu0
        %v983 = vadd.f32 %v913, %v982
        %v984 = vpop.f32.mrf.mxu0
        %985 = vdwg.mxu0
        %vm986 = vcmp.gt.f32.partialorder %v842, 0.0
        %vm987 = vcmp.gt.f32.partialorder %v844, 0.0
        %vm988 = vcmp.gt.f32.partialorder %v983, 0.0
        %v989 = vmul.f32 %v842, 0.007
        %v990 = vmul.f32 %v844, 0.007
        %v991 = vmul.f32 %v983, 0.007
        %v992 = vsel %vm986, %v842, %v989
        %v993 = vsel %vm987, %v844, %v990
        %v994 = vsel %vm988, %v983, %v991
        %995 = vst [vmem:[%s538] sm:$0xff] %v992
        %996 = vst [vmem:[%s538 + $0x8] sm:$0xff] %v993
        %997 = vst [vmem:[%s538 + $0x10] sm:$0xff] %v994
        %s998 = smul.u32 3, %s19
        %p999 = scmp.lt.s32.totalorder %s18, 0
        %s1000 = scalar_select %p999, %s18, 0
        %p1001 = scmp.lt.s32.totalorder %s998, 5
        %s1002 = scalar_select %p1001, %s998, 5
        %s1003 = smul.addr %s1000, 6
        %s1004 = sadd.s32 %s1002, %s1003
        %s1005 = smul.addr %s1004, 8
        %s1006 = scalar_lea.vmem %s3, %s1005
        // Predicated region
        $region56: #{model_forward.1} parent=50 // pred_check
          %p1007 = pneg %p124
        $region57: #{model_forward.1} parent=50 // pred_check_branch
          %1009 = sbr.rel (%p1007) target = $region59
        $region58: #{model_forward.1} parent=50 // pred_region
          %s1010 = smul.u32 3, %s19
        $region59: #{model_forward.1} parent=50 // pred_fallthru
          _
      $region51: #{model_forward.1} parent=5 // pred_fallthru
        _
      %p1011 = scmp.le.s32.totalorder 2, %s9
      // Predicated region
      $region60: #{model_forward.1} parent=5 // pred_check
        %p1012 = pneg %p1011
      $region61: #{model_forward.1} parent=5 // pred_check_branch
        %1014 = sbr.rel (%p1012) target = $region63
      $region62: #{model_forward.1} parent=5 // pred_region
        %s1015 = ssub.s32 %s9, 2
        // Predicated region
        $region64: #{model_forward.1} parent=62 // pred_check
          %p1016 = pneg %p130
        $region65: #{model_forward.1} parent=62 // pred_check_branch
          %1018 = sbr.rel (%p1016) target = $region67
        $region66: #{model_forward.1} parent=62 // pred_region
          %s1019 = smul.u32 3, %s21
          %p1020 = scmp.lt.s32.totalorder %s20, 0
          %s1021 = scalar_select %p1020, %s20, 0
          %p1022 = scmp.lt.s32.totalorder %s1019, 5
          %s1023 = scalar_select %p1022, %s1019, 5
          %s1024 = smul.addr %s1021, 6
          %s1025 = sadd.s32 %s1023, %s1024
          %s1026 = smul.addr %s1025, 8
          %s1027 = scalar_lea.vmem %s3, %s1026
        $region67: #{model_forward.1} parent=62 // pred_fallthru
          _
      $region63: #{model_forward.1} parent=5 // pred_fallthru
        _
    $region6: #{model_forward.1} parent=1 // loop_footer
      %s13 = sadd.s32 1, %s9
    $region7: #{model_forward.1} parent=1 // loop_footer_branch
      %8 = sbr.rel target = $region3
    $region8: #{model_forward.1} parent=1 // loop_exit
      _

</llo_original>
